<compile_context>
chip_gen: v6e
topology: v6e:2x2x1
jax: 0.10.0
libtpu: 0.0.40
codegen_flags: <defaults>
</compile_context>

<pallas_src>
import functools

import jax
import jax.numpy as jnp
from jax.experimental import pallas as pl
from jax.experimental.pallas import tpu as pltpu

_MXU_DTYPE = jnp.bfloat16


def _round_up(x, m):
    return ((x + m - 1) // m) * m


def _pad2(m, rows, cols, dtype):
    return jnp.zeros((rows, cols), dtype).at[: m.shape[0], : m.shape[1]].set(
        m.astype(dtype))


def _vmem_limit(nbytes):
    # Headroom for double buffers / compiler temps, clamped below the smallest
    # physical per-core VMEM (v7x: 64 MiB).
    return int(min(max(2 * nbytes + (4 << 20), 16 << 20), 56 << 20))


def _vmem_capacity():
    try:
        return int(pltpu.get_tpu_info().vmem_capacity_bytes)
    except Exception:
        return 64 << 20  # conservative (v7x per-core)


def _row_tile(np_):
    return 256 if np_ % 256 == 0 else 128


# --------------------------------------------------------------------------
# Kernels
# --------------------------------------------------------------------------
def _gcn2_fused_kernel(a_ref, x_ref, w1_ref, b1_ref, w2_ref, b2_ref, o_ref):
    """Both GCN layers fused, fully VMEM resident (small-graph path).
    bf16 MXU operands, f32 accumulation; bias/ReLU in f32 on the VPU."""
    a = a_ref[...]                                                   # bf16
    xw = jnp.dot(x_ref[...], w1_ref[...], preferred_element_type=jnp.float32)
    h = jnp.dot(a, xw.astype(a.dtype), preferred_element_type=jnp.float32)
    h = jnp.maximum(h + b1_ref[...], 0.0)          # conv1 bias + ReLU (f32, VPU)
    # dropout(p=0.5) is identity at inference time.
    hw = jnp.dot(h.astype(w2_ref.dtype), w2_ref[...],
                 preferred_element_type=jnp.float32)
    out = jnp.dot(a, hw.astype(a.dtype), preferred_element_type=jnp.float32)
    o_ref[...] = (out + b2_ref[...]).astype(o_ref.dtype)


def _agg_transform_kernel(a_ref, z_ref, w_ref, b_ref, o_ref, *, apply_relu):
    """One GCN layer, one A_hat row tile per grid step: (A_tile @ Z) @ W + b."""
    az = jnp.dot(a_ref[...], z_ref[...], preferred_element_type=jnp.float32)
    y = jnp.dot(az.astype(w_ref.dtype), w_ref[...],
                preferred_element_type=jnp.float32)
    y = y + b_ref[...]
    if apply_relu:
        y = jnp.maximum(y, 0.0)
    o_ref[...] = y.astype(o_ref.dtype)


def _agg_kernel(a_ref, zw_ref, b_ref, o_ref, *, apply_relu):
    """One GCN layer with pre-transformed features: A_tile @ (ZW) + b."""
    y = jnp.dot(a_ref[...], zw_ref[...],
                preferred_element_type=jnp.float32) + b_ref[...]
    if apply_relu:
        y = jnp.maximum(y, 0.0)
    o_ref[...] = y.astype(o_ref.dtype)


def _feat_transform_kernel(z_ref, w_ref, o_ref):
    """Row-tiled feature transform Z @ W (used when Fp > Hp)."""
    o_ref[...] = jnp.dot(z_ref[...], w_ref[...],
                         preferred_element_type=jnp.float32).astype(o_ref.dtype)


# --------------------------------------------------------------------------
# pallas_call wrappers
# --------------------------------------------------------------------------
def _gcn2_fused(a_p, x_p, w1_p, b1_p, w2_p, b2_p, out_dtype):
    Np, Fp = x_p.shape
    H1p = w1_p.shape[1]
    H2p = w2_p.shape[1]
    full = lambda shape: pl.BlockSpec(shape, lambda i: (0,) * len(shape))
    flops = 2 * (Np * Fp * H1p + Np * Np * H1p + Np * H1p * H2p + Np * Np * H2p)
    nbytes = (2 * (Np * Np + Np * Fp + Fp * H1p + H1p * H2p)
              + 4 * (H1p + H2p + Np * H2p))
    work = (2 * (Np * Np + Np * Fp + Fp * H1p + H1p * H2p)
            + 4 * (H1p + H2p) + 4 * Np * (2 * H1p + 2 * H2p))
    return pl.pallas_call(
        _gcn2_fused_kernel,
        out_shape=jax.ShapeDtypeStruct((Np, H2p), out_dtype),
        grid=(1,),
        in_specs=[full((Np, Np)), full((Np, Fp)), full((Fp, H1p)),
                  full((1, H1p)), full((H1p, H2p)), full((1, H2p))],
        out_specs=full((Np, H2p)),
        compiler_params=pltpu.CompilerParams(
            dimension_semantics=("arbitrary",),
            vmem_limit_bytes=_vmem_limit(work)),
        cost_estimate=pl.CostEstimate(flops=flops, transcendentals=0,
                                      bytes_accessed=nbytes),
    )(a_p, x_p, w1_p, b1_p, w2_p, b2_p)


def _feat_transform(z_p, w_p):
    Np, Fp = z_p.shape
    Hp = w_p.shape[1]
    tr = _row_tile(Np)
    work = 2 * (2 * tr * Fp + Fp * Hp + 2 * tr * Hp)
    return pl.pallas_call(
        _feat_transform_kernel,
        out_shape=jax.ShapeDtypeStruct((Np, Hp), _MXU_DTYPE),
        grid=(Np // tr,),
        in_specs=[pl.BlockSpec((tr, Fp), lambda i: (i, 0)),
                  pl.BlockSpec((Fp, Hp), lambda i: (0, 0))],
        out_specs=pl.BlockSpec((tr, Hp), lambda i: (i, 0)),
        compiler_params=pltpu.CompilerParams(
            dimension_semantics=("parallel",),
            vmem_limit_bytes=_vmem_limit(work)),
        cost_estimate=pl.CostEstimate(
            flops=2 * Np * Fp * Hp, transcendentals=0,
            bytes_accessed=2 * (Np * Fp + Fp * Hp + Np * Hp)),
    )(z_p, w_p)


def _gcn_layer_tiled(a_p, z_p, w_p, b_p, *, apply_relu, out_dtype):
    """One GCNConv layer: act(A_hat @ (Z @ W) + b).  A_hat streamed in row
    tiles (double-buffered by BlockSpec), Z / W resident, row axis 'parallel'
    so v7x megacore shards tiles across both TensorCores."""
    Np = a_p.shape[0]
    Fp = z_p.shape[1]
    Hp = w_p.shape[1]
    tr = _row_tile(Np)
    grid = (Np // tr,)

    if Fp <= Hp:
        # Aggregate the narrower Fp-wide matrix, transform after.
        kernel = functools.partial(_agg_transform_kernel, apply_relu=apply_relu)
        in_specs = [
            pl.BlockSpec((tr, Np), lambda i: (i, 0)),   # A_hat row tile (streamed)
            pl.BlockSpec((Np, Fp), lambda i: (0, 0)),   # Z (resident)
            pl.BlockSpec((Fp, Hp), lambda i: (0, 0)),   # W (resident)
            pl.BlockSpec((1, Hp), lambda i: (0, 0)),    # bias (f32)
        ]
        args = (a_p, z_p, w_p, b_p)
        flops = 2 * (Np * Np * Fp + Np * Fp * Hp)
        nbytes = 2 * (Np * Np + Np * Fp + Fp * Hp) + 4 * Hp
        work = 2 * (2 * tr * Np + Np * Fp + Fp * Hp) + 4 * (Hp + 2 * tr * Hp)
    else:
        # Fp > Hp: transform first so only the narrower Hp-wide matrix is
        # aggregated (free FLOP reduction on the dominant Np^2 term).
        zw_p = _feat_transform(z_p, w_p)
        kernel = functools.partial(_agg_kernel, apply_relu=apply_relu)
        in_specs = [
            pl.BlockSpec((tr, Np), lambda i: (i, 0)),
            pl.BlockSpec((Np, Hp), lambda i: (0, 0)),
            pl.BlockSpec((1, Hp), lambda i: (0, 0)),
        ]
        args = (a_p, zw_p, b_p)
        flops = 2 * Np * Np * Hp
        nbytes = 2 * (Np * Np + Np * Hp) + 4 * Hp
        work = 2 * (2 * tr * Np + Np * Hp) + 4 * (Hp + 2 * tr * Hp)

    out_bytes = jnp.dtype(out_dtype).itemsize * Np * Hp
    return pl.pallas_call(
        kernel,
        out_shape=jax.ShapeDtypeStruct((Np, Hp), out_dtype),
        grid=grid,
        in_specs=in_specs,
        out_specs=pl.BlockSpec((tr, Hp), lambda i: (i, 0)),
        compiler_params=pltpu.CompilerParams(
            dimension_semantics=("parallel",),
            vmem_limit_bytes=_vmem_limit(work)),
        cost_estimate=pl.CostEstimate(flops=flops, transcendentals=0,
                                      bytes_accessed=nbytes + out_bytes),
    )(*args)


# --------------------------------------------------------------------------
# Graph normalization + forward
# --------------------------------------------------------------------------
def gcn_norm_dense(edge_index, edge_weight, num_nodes, dtype=jnp.float32):
    """Dense A_hat = D^-1/2 (A + I) D^-1/2 matching PyG GCNConv's gcn_norm
    (flow source->target, add_remaining_self_loops with fill_value=1.0,
    symmetric normalization).  Existing self-loops keep their weight and are
    not double-counted."""
    src = edge_index[0].astype(jnp.int32)
    dst = edge_index[1].astype(jnp.int32)
    if edge_weight is None:
        edge_weight = jnp.ones((src.shape[0],), dtype)
    ew = edge_weight.astype(dtype)

    is_loop = src == dst
    # Non-self-loop edges keep their weight; self-loop edges are replaced by a
    # single per-node loop whose weight is the existing one (else 1.0).
    ew_nl = jnp.where(is_loop, jnp.zeros_like(ew), ew)
    loop_idx = jnp.where(is_loop, src, num_nodes)            # OOB -> dropped
    loop_w = jnp.ones((num_nodes,), dtype).at[loop_idx].set(ew, mode="drop")

    deg = jnp.zeros((num_nodes,), dtype).at[dst].add(ew_nl) + loop_w
    dinv = jnp.where(deg > 0,
                     jax.lax.rsqrt(jnp.maximum(deg, jnp.asarray(1e-30, dtype))),
                     jnp.zeros_like(deg))

    nodes = jnp.arange(num_nodes, dtype=jnp.int32)
    a = jnp.zeros((num_nodes, num_nodes), dtype)
    a = a.at[dst, src].add(dinv[dst] * ew_nl * dinv[src])     # out[i] += n_ji x_j
    a = a.at[nodes, nodes].add(dinv * loop_w * dinv)
    return a


def directed_gcn_forward(x, edge_index, edge_weight, w1, b1, w2, b2, *,
                         force_tiled=False):
    """x: [N, F]; edge_index: [2, E] int; edge_weight: [E];
       w1: [F, H1], b1: [H1]; w2: [H1, H2], b2: [H2]  ->  [N, H2] (f32)."""
    N, F = x.shape
    H1 = w1.shape[1]
    H2 = w2.shape[1]

    a = gcn_norm_dense(edge_index, edge_weight, N, dtype=jnp.float32)

    Np = _round_up(N, 128)
    Fp = _round_up(F, 128)
    H1p = _round_up(H1, 128)
    H2p = _round_up(H2, 128)

    # bf16 MXU operands; biases (and all accumulation / bias / ReLU) stay f32.
    a_p = _pad2(a, Np, Np, _MXU_DTYPE)
    x_p = _pad2(x, Np, Fp, _MXU_DTYPE)
    w1_p = _pad2(w1, Fp, H1p, _MXU_DTYPE)
    w2_p = _pad2(w2, H1p, H2p, _MXU_DTYPE)
    b1_p = _pad2(b1.reshape(1, -1), 1, H1p, jnp.float32)
    b2_p = _pad2(b2.reshape(1, -1), 1, H2p, jnp.float32)

    # Gate the fully fused single-shot path on its estimated VMEM footprint.
    fused_bytes = (2 * (Np * Np + Np * Fp + Fp * H1p + H1p * H2p)
                   + 4 * Np * (2 * H1p + 2 * H2p))
    use_fused = (not force_tiled) and fused_bytes <= _vmem_capacity() // 6

    if use_fused:
        out_p = _gcn2_fused(a_p, x_p, w1_p, b1_p, w2_p, b2_p, jnp.float32)
    else:
        # Row-tiled streaming path: A_hat streamed twice, layer-1 activations
        # kept in bf16 between the two calls.
        h_p = _gcn_layer_tiled(a_p, x_p, w1_p, b1_p,
                               apply_relu=True, out_dtype=_MXU_DTYPE)
        out_p = _gcn_layer_tiled(a_p, h_p, w2_p, b2_p,
                                 apply_relu=False, out_dtype=jnp.float32)

    # Padded rows/cols are exact zeros and never aggregated into real nodes.
    return out_p[:N, :H2]


def init_params(key, num_features, hidden_channels, dtype=jnp.float32):
    """Deterministic init (uniform +/- 1/sqrt(fan_in)) for the two GCNConv layers."""
    k1, k2, k3, k4 = jax.random.split(key, 4)
    b1_ = 1.0 / (num_features ** 0.5)
    b2_ = 1.0 / (hidden_channels ** 0.5)
    w1 = jax.random.uniform(k1, (num_features, hidden_channels), dtype, -b1_, b1_)
    b1 = jax.random.uniform(k2, (hidden_channels,), dtype, -b1_, b1_)
    w2 = jax.random.uniform(k3, (hidden_channels, hidden_channels), dtype, -b2_, b2_)
    b2 = jax.random.uniform(k4, (hidden_channels,), dtype, -b2_, b2_)
    return w1, b1, w2, b2


if __name__ == "__main__":
    key = jax.random.PRNGKey(0)

    def make_case(k, N, F, HID, E):
        kx, ke, kw, kp = jax.random.split(k, 4)
        x = jax.random.normal(kx, (N, F), dtype=jnp.float32)
        edge_index = jax.random.randint(ke, (2, E), 0, N, dtype=jnp.int32)
        edge_weight = jax.random.uniform(kw, (E,), jnp.float32, 0.1, 1.0)
        return x, edge_index, edge_weight, init_params(kp, F, HID)

    def reference(x, edge_index, edge_weight, w1, b1, w2, b2):
        # Pure-JAX reference with the same bf16-rounded MXU operands.
        rb = lambda t: t.astype(jnp.bfloat16).astype(jnp.float32)
        a = rb(gcn_norm_dense(edge_index, edge_weight, x.shape[0]))
        h = jnp.maximum(a @ (rb(x) @ rb(w1)) + b1, 0.0)
        return a @ (h @ rb(w2)) + b2

    # (name, N, F, HID, E, force_tiled)
    cases = [
        ("fused",     12,  16, 32,  40, False),   # single-shot fused path
        ("tiled",    300,  16, 32, 900, True),    # row-tiled, (A@X)@W path
        ("tiled-zw", 300, 200, 32, 900, True),    # row-tiled, pre-transform path
    ]
    k = key
    for name, N, F, HID, E, force in cases:
        k, sub = jax.random.split(k)
        x, ei, ew, (w1, b1, w2, b2) = make_case(sub, N, F, HID, E)
        out = directed_gcn_forward(x, ei, ew, w1, b1, w2, b2, force_tiled=force)
        out = jax.block_until_ready(out)
        ref = reference(x, ei, ew, w1, b1, w2, b2)
        assert out.shape == (N, HID), (name, out.shape)
        err = float(jnp.max(jnp.abs(out - ref)))
        assert jnp.allclose(out, ref, atol=7.5e-2, rtol=5e-2), (name, err)

    print("KERNEL_OK")
</pallas_src>

<mosaic_0001>
module attributes {stable_mosaic.version = 11 : i64} {
  func.func @_gcn2_fused_kernel(%arg0: i32, %arg1: memref<128x128xbf16, #tpu.memory_space<vmem>>, %arg2: memref<128x128xbf16, #tpu.memory_space<vmem>>, %arg3: memref<128x128xbf16, #tpu.memory_space<vmem>>, %arg4: memref<1x128xf32, #tpu.memory_space<vmem>>, %arg5: memref<128x128xbf16, #tpu.memory_space<vmem>>, %arg6: memref<1x128xf32, #tpu.memory_space<vmem>>, %arg7: memref<128x128xf32, #tpu.memory_space<vmem>>) attributes {dimension_semantics = [#tpu.dimension_semantics<arbitrary>], iteration_bounds = array<i64: 1>, scalar_prefetch = 0 : i64, scratch_operands = 0 : i64, tpu.core_type = #tpu.core_type<tc>, window_params = [{pipeline_mode = #tpu.pipeline_mode<synchronous>, transform_indices = @transform_0, window_bounds = array<i64: 128, 128>}, {pipeline_mode = #tpu.pipeline_mode<synchronous>, transform_indices = @transform_1, window_bounds = array<i64: 128, 128>}, {pipeline_mode = #tpu.pipeline_mode<synchronous>, transform_indices = @transform_2, window_bounds = array<i64: 128, 128>}, {pipeline_mode = #tpu.pipeline_mode<synchronous>, transform_indices = @transform_3, window_bounds = array<i64: 1, 128>}, {pipeline_mode = #tpu.pipeline_mode<synchronous>, transform_indices = @transform_4, window_bounds = array<i64: 128, 128>}, {pipeline_mode = #tpu.pipeline_mode<synchronous>, transform_indices = @transform_5, window_bounds = array<i64: 1, 128>}, {pipeline_mode = #tpu.pipeline_mode<synchronous>, transform_indices = @transform_6, window_bounds = array<i64: 128, 128>}]} {
    %c0 = arith.constant 0 : index
    %c0_0 = arith.constant 0 : index
    %0 = vector.load %arg1[%c0, %c0_0] : memref<128x128xbf16, #tpu.memory_space<vmem>>, vector<128x128xbf16>
    %c0_1 = arith.constant 0 : index
    %c0_2 = arith.constant 0 : index
    %1 = vector.load %arg2[%c0_1, %c0_2] : memref<128x128xbf16, #tpu.memory_space<vmem>>, vector<128x128xbf16>
    %c0_3 = arith.constant 0 : index
    %c0_4 = arith.constant 0 : index
    %2 = vector.load %arg3[%c0_3, %c0_4] : memref<128x128xbf16, #tpu.memory_space<vmem>>, vector<128x128xbf16>
    %cst = arith.constant dense<0.000000e+00> : vector<128x128xf32>
    %3 = tpu.matmul %1, %2, %cst {dimension_numbers = #tpu.dot_dimension_numbers<[1], [0], [0], [1], [0, 0, 1, 1], [], []>} : vector<128x128xbf16>, vector<128x128xbf16>, vector<128x128xf32> -> vector<128x128xf32>
    %4 = arith.truncf %3 : vector<128x128xf32> to vector<128x128xbf16>
    %cst_5 = arith.constant dense<0.000000e+00> : vector<128x128xf32>
    %5 = tpu.matmul %0, %4, %cst_5 {dimension_numbers = #tpu.dot_dimension_numbers<[1], [0], [0], [1], [0, 0, 1, 1], [], []>} : vector<128x128xbf16>, vector<128x128xbf16>, vector<128x128xf32> -> vector<128x128xf32>
    %c0_6 = arith.constant 0 : index
    %c0_7 = arith.constant 0 : index
    %6 = vector.load %arg4[%c0_6, %c0_7] : memref<1x128xf32, #tpu.memory_space<vmem>>, vector<1x128xf32>
    %7 = vector.broadcast %6 : vector<1x128xf32> to vector<128x128xf32>
    %8 = arith.addf %5, %7 : vector<128x128xf32>
    %cst_8 = arith.constant 0.000000e+00 : f32
    %9 = vector.broadcast %cst_8 : f32 to vector<128x128xf32>
    %10 = arith.maximumf %8, %9 : vector<128x128xf32>
    %11 = arith.truncf %10 : vector<128x128xf32> to vector<128x128xbf16>
    %c0_9 = arith.constant 0 : index
    %c0_10 = arith.constant 0 : index
    %12 = vector.load %arg5[%c0_9, %c0_10] : memref<128x128xbf16, #tpu.memory_space<vmem>>, vector<128x128xbf16>
    %cst_11 = arith.constant dense<0.000000e+00> : vector<128x128xf32>
    %13 = tpu.matmul %11, %12, %cst_11 {dimension_numbers = #tpu.dot_dimension_numbers<[1], [0], [0], [1], [0, 0, 1, 1], [], []>} : vector<128x128xbf16>, vector<128x128xbf16>, vector<128x128xf32> -> vector<128x128xf32>
    %14 = arith.truncf %13 : vector<128x128xf32> to vector<128x128xbf16>
    %cst_12 = arith.constant dense<0.000000e+00> : vector<128x128xf32>
    %15 = tpu.matmul %0, %14, %cst_12 {dimension_numbers = #tpu.dot_dimension_numbers<[1], [0], [0], [1], [0, 0, 1, 1], [], []>} : vector<128x128xbf16>, vector<128x128xbf16>, vector<128x128xf32> -> vector<128x128xf32>
    %c0_13 = arith.constant 0 : index
    %c0_14 = arith.constant 0 : index
    %16 = vector.load %arg6[%c0_13, %c0_14] : memref<1x128xf32, #tpu.memory_space<vmem>>, vector<1x128xf32>
    %17 = vector.broadcast %16 : vector<1x128xf32> to vector<128x128xf32>
    %18 = arith.addf %15, %17 : vector<128x128xf32>
    %c0_15 = arith.constant 0 : index
    %c0_16 = arith.constant 0 : index
    %19 = vector.load %arg7[%c0_15, %c0_16] : memref<128x128xf32, #tpu.memory_space<vmem>>, vector<128x128xf32>
    tpu.vector_store %arg7[%c0_15, %c0_16], %18 {strides = array<i32>} : memref<128x128xf32, #tpu.memory_space<vmem>>, vector<128x128xf32>,
    return
  }
  func.func @transform_0(%arg0: i32) -> (i32, i32) {
    %c0_i32 = arith.constant 0 : i32
    %c0_i32_0 = arith.constant 0 : i32
    %c0_i32_1 = arith.constant 0 : i32
    return %c0_i32, %c0_i32_0 : i32, i32
  }
  func.func @transform_1(%arg0: i32) -> (i32, i32) {
    %c0_i32 = arith.constant 0 : i32
    %c0_i32_0 = arith.constant 0 : i32
    %c0_i32_1 = arith.constant 0 : i32
    return %c0_i32, %c0_i32_0 : i32, i32
  }
  func.func @transform_2(%arg0: i32) -> (i32, i32) {
    %c0_i32 = arith.constant 0 : i32
    %c0_i32_0 = arith.constant 0 : i32
    %c0_i32_1 = arith.constant 0 : i32
    return %c0_i32, %c0_i32_0 : i32, i32
  }
  func.func @transform_3(%arg0: i32) -> (i32, i32) {
    %c0_i32 = arith.constant 0 : i32
    %c0_i32_0 = arith.constant 0 : i32
    %c0_i32_1 = arith.constant 0 : i32
    return %c0_i32, %c0_i32_0 : i32, i32
  }
  func.func @transform_4(%arg0: i32) -> (i32, i32) {
    %c0_i32 = arith.constant 0 : i32
    %c0_i32_0 = arith.constant 0 : i32
    %c0_i32_1 = arith.constant 0 : i32
    return %c0_i32, %c0_i32_0 : i32, i32
  }
  func.func @transform_5(%arg0: i32) -> (i32, i32) {
    %c0_i32 = arith.constant 0 : i32
    %c0_i32_0 = arith.constant 0 : i32
    %c0_i32_1 = arith.constant 0 : i32
    return %c0_i32, %c0_i32_0 : i32, i32
  }
  func.func @transform_6(%arg0: i32) -> (i32, i32) {
    %c0_i32 = arith.constant 0 : i32
    %c0_i32_0 = arith.constant 0 : i32
    %c0_i32_1 = arith.constant 0 : i32
    return %c0_i32, %c0_i32_0 : i32, i32
  }
}

</mosaic_0001>

<llo_original>
// kernel: tpu_custom_call.1
$region0: #{tpu_custom_call.1}
  #allocation0 [shape = 'u32[]', space=smem, size = 0x4, offset = 0x4, fixed_abs, tag = 'smem constant byte address 0x4 - core index']
  #allocation1 [shape = 'u32[144,128]{1,0:T(1,128)}', space=vmem, size = 0x12000, scoped, tag = 'internal scratch']
  %s0 = inlined_call_operand.hbm [shape: bf16[128,128], index: 0, kind: input, shape index: {}]
  %s1 = inlined_call_operand.hbm [shape: bf16[128,128], index: 1, kind: input, shape index: {}]
  %s2 = inlined_call_operand.hbm [shape: bf16[128,128], index: 2, kind: input, shape index: {}]
  %s3 = inlined_call_operand.vmem [shape: f32[1,128], index: 3, kind: input, shape index: {}]
  %s4 = inlined_call_operand.hbm [shape: bf16[128,128], index: 4, kind: input, shape index: {}]
  %s5 = inlined_call_operand.vmem [shape: f32[1,128], index: 5, kind: input, shape index: {}]
  %s6 = inlined_call_operand.hbm [shape: f32[128,128], index: 6, kind: output, shape index: {}]
  %s7 = sld [smem:[#allocation0]]
  $region50: #{tpu_custom_call.1} parent=0
    _
  %s9 = ssub.s32 1, %s7
  %s10 = scalar_select 0, %s9, %s7
  $region1: #{tpu_custom_call.1} parent=0
    #allocation2 [shape = 'u8[32768]{0}', space=vmem, size = 0x8000, scoped, tag = 'input window, operand 0, single buffered']
    #allocation3 [shape = 's32[1]{0}', space=sflag, size = 0x4, scoped, tag = 'scoped memory for tpu_custom_call.1']
    #allocation4 [shape = 's32[1]{0}', space=sflag, size = 0x4, scoped, tag = 'scoped memory for tpu_custom_call.1']
    #allocation5 [shape = 'u8[32768]{0}', space=vmem, size = 0x8000, scoped, tag = 'input window, operand 1, single buffered']
    #allocation6 [shape = 's32[1]{0}', space=sflag, size = 0x4, scoped, tag = 'scoped memory for tpu_custom_call.1']
    #allocation7 [shape = 'u8[32768]{0}', space=vmem, size = 0x8000, scoped, tag = 'input window, operand 2, single buffered']
    #allocation8 [shape = 'u8[32768]{0}', space=vmem, size = 0x8000, scoped, tag = 'input window, operand 4, single buffered']
    #allocation9 [shape = 's32[1]{0}', space=sflag, size = 0x4, scoped, tag = 'scoped memory for tpu_custom_call.1']
    #allocation10 [shape = 'u8[65536]{0}', space=vmem, size = 0x10000, scoped, tag = 'output window, operand 0, single buffered']
    %11 = vsyncpa [#allocation3], 0
    %12 = vsyncpa [#allocation6], 0
    %13 = vsyncpa [#allocation9], 0
    %14 = vsyncpa [#allocation4], 0
    // Predicated region
    $region2: #{tpu_custom_call.1} parent=1 // pred_check
      _
    $region3: #{tpu_custom_call.1} parent=1 // pred_check_branch
      %16 = sbr.rel (0) target = $region5
    $region4: #{tpu_custom_call.1} parent=1 // pred_region
      %s18 = ssub.s32 1024, 1024
      %19 = vsyncadd [#allocation3], %s18
      %s20 = sshll.u32 [#allocation2], 4
      %s21 = int_to_ptr.vmem [resolvable:$true] %s20
      %26 = dma.hbm_to_vmem [thread:$0]  %s0, 1024, %s21, [#allocation3], 64, 64, 4
    $region5: #{tpu_custom_call.1} parent=1 // pred_fallthru
      _
    // Predicated region
    $region6: #{tpu_custom_call.1} parent=1 // pred_check
      _
    $region7: #{tpu_custom_call.1} parent=1 // pred_check_branch
      %28 = sbr.rel (0) target = $region9
    $region8: #{tpu_custom_call.1} parent=1 // pred_region
      %s30 = ssub.s32 1024, 1024
      %31 = vsyncadd [#allocation6], %s30
      %s32 = sshll.u32 [#allocation5], 4
      %s33 = int_to_ptr.vmem [resolvable:$true] %s32
      %38 = dma.hbm_to_vmem [thread:$0]  %s1, 1024, %s33, [#allocation6], 64, 64, 4
    $region9: #{tpu_custom_call.1} parent=1 // pred_fallthru
      _
    // Predicated region
    $region10: #{tpu_custom_call.1} parent=1 // pred_check
      _
    $region11: #{tpu_custom_call.1} parent=1 // pred_check_branch
      %40 = sbr.rel (0) target = $region13
    $region12: #{tpu_custom_call.1} parent=1 // pred_region
      %s42 = ssub.s32 1024, 1024
      %43 = vsyncadd [#allocation6], %s42
      %s44 = sshll.u32 [#allocation7], 4
      %s45 = int_to_ptr.vmem [resolvable:$true] %s44
      %50 = dma.hbm_to_vmem [thread:$0]  %s2, 1024, %s45, [#allocation6], 64, 64, 4
    $region13: #{tpu_custom_call.1} parent=1 // pred_fallthru
      _
    // Predicated region
    $region14: #{tpu_custom_call.1} parent=1 // pred_check
      _
    $region15: #{tpu_custom_call.1} parent=1 // pred_check_branch
      %52 = sbr.rel (0) target = $region17
    $region16: #{tpu_custom_call.1} parent=1 // pred_region
      _
    $region17: #{tpu_custom_call.1} parent=1 // pred_fallthru
      _
    // Predicated region
    $region18: #{tpu_custom_call.1} parent=1 // pred_check
      _
    $region19: #{tpu_custom_call.1} parent=1 // pred_check_branch
      %54 = sbr.rel (0) target = $region21
    $region20: #{tpu_custom_call.1} parent=1 // pred_region
      %s56 = ssub.s32 1024, 1024
      %57 = vsyncadd [#allocation9], %s56
      %s58 = sshll.u32 [#allocation8], 4
      %s59 = int_to_ptr.vmem [resolvable:$true] %s58
      %64 = dma.hbm_to_vmem [thread:$0]  %s4, 1024, %s59, [#allocation9], 64, 64, 4
    $region21: #{tpu_custom_call.1} parent=1 // pred_fallthru
      _
    // Predicated region
    $region22: #{tpu_custom_call.1} parent=1 // pred_check
      _
    $region23: #{tpu_custom_call.1} parent=1 // pred_check_branch
      %66 = sbr.rel (0) target = $region25
    $region24: #{tpu_custom_call.1} parent=1 // pred_region
      _
    $region25: #{tpu_custom_call.1} parent=1 // pred_fallthru
      _
    // Predicated region
    $region26: #{tpu_custom_call.1} parent=1 // pred_check
      _
    $region27: #{tpu_custom_call.1} parent=1 // pred_check_branch
      %68 = sbr.rel (0) target = $region29
    $region28: #{tpu_custom_call.1} parent=1 // pred_region
      %69 = dma.done [#allocation3], 1024
    $region29: #{tpu_custom_call.1} parent=1 // pred_fallthru
      _
    // Predicated region
    $region30: #{tpu_custom_call.1} parent=1 // pred_check
      _
    $region31: #{tpu_custom_call.1} parent=1 // pred_check_branch
      %71 = sbr.rel (0) target = $region33
    $region32: #{tpu_custom_call.1} parent=1 // pred_region
      %72 = dma.done [#allocation6], 1024
    $region33: #{tpu_custom_call.1} parent=1 // pred_fallthru
      _
    // Predicated region
    $region34: #{tpu_custom_call.1} parent=1 // pred_check
      _
    $region35: #{tpu_custom_call.1} parent=1 // pred_check_branch
      %74 = sbr.rel (0) target = $region37
    $region36: #{tpu_custom_call.1} parent=1 // pred_region
      %75 = dma.done [#allocation6], 1024
    $region37: #{tpu_custom_call.1} parent=1 // pred_fallthru
      _
    // Predicated region
    $region38: #{tpu_custom_call.1} parent=1 // pred_check
      _
    $region39: #{tpu_custom_call.1} parent=1 // pred_check_branch
      %77 = sbr.rel (0) target = $region41
    $region40: #{tpu_custom_call.1} parent=1 // pred_region
      %78 = dma.done [#allocation9], 1024
    $region41: #{tpu_custom_call.1} parent=1 // pred_fallthru
      _
    %v80 = vld [vmem:[#allocation2] sm:$0xf]
    %v81 = vld [vmem:[#allocation2 + $0x4] sm:$0xf]
    %v82 = vld [vmem:[#allocation2 + $0x8] sm:$0xf]
    %v83 = vld [vmem:[#allocation2 + $0xc] sm:$0xf]
    %v84 = vld [vmem:[#allocation2 + $0x10] sm:$0xf]
    %v85 = vld [vmem:[#allocation2 + $0x14] sm:$0xf]
    %v86 = vld [vmem:[#allocation2 + $0x18] sm:$0xf]
    %v87 = vld [vmem:[#allocation2 + $0x1c] sm:$0xf]
    %v88 = vld [vmem:[#allocation2 + $0x20] sm:$0xf]
    %v89 = vld [vmem:[#allocation2 + $0x24] sm:$0xf]
    %v90 = vld [vmem:[#allocation2 + $0x28] sm:$0xf]
    %v91 = vld [vmem:[#allocation2 + $0x2c] sm:$0xf]
    %v92 = vld [vmem:[#allocation2 + $0x30] sm:$0xf]
    %v93 = vld [vmem:[#allocation2 + $0x34] sm:$0xf]
    %v94 = vld [vmem:[#allocation2 + $0x38] sm:$0xf]
    %v95 = vld [vmem:[#allocation2 + $0x3c] sm:$0xf]
    %v96 = vld [vmem:[#allocation5] sm:$0xf]
    %v97 = vld [vmem:[#allocation5 + $0x4] sm:$0xf]
    %v98 = vld [vmem:[#allocation5 + $0x8] sm:$0xf]
    %v99 = vld [vmem:[#allocation5 + $0xc] sm:$0xf]
    %v100 = vld [vmem:[#allocation5 + $0x10] sm:$0xf]
    %v101 = vld [vmem:[#allocation5 + $0x14] sm:$0xf]
    %v102 = vld [vmem:[#allocation5 + $0x18] sm:$0xf]
    %v103 = vld [vmem:[#allocation5 + $0x1c] sm:$0xf]
    %v104 = vld [vmem:[#allocation5 + $0x20] sm:$0xf]
    %v105 = vld [vmem:[#allocation5 + $0x24] sm:$0xf]
    %v106 = vld [vmem:[#allocation5 + $0x28] sm:$0xf]
    %v107 = vld [vmem:[#allocation5 + $0x2c] sm:$0xf]
    %v108 = vld [vmem:[#allocation5 + $0x30] sm:$0xf]
    %v109 = vld [vmem:[#allocation5 + $0x34] sm:$0xf]
    %v110 = vld [vmem:[#allocation5 + $0x38] sm:$0xf]
    %v111 = vld [vmem:[#allocation5 + $0x3c] sm:$0xf]
    %v112 = vld [vmem:[#allocation7] sm:$0xf]
    %v113 = vld [vmem:[#allocation7 + $0x4] sm:$0xf]
    %v114 = vld [vmem:[#allocation7 + $0x8] sm:$0xf]
    %v115 = vld [vmem:[#allocation7 + $0xc] sm:$0xf]
    %v116 = vld [vmem:[#allocation7 + $0x10] sm:$0xf]
    %v117 = vld [vmem:[#allocation7 + $0x14] sm:$0xf]
    %v118 = vld [vmem:[#allocation7 + $0x18] sm:$0xf]
    %v119 = vld [vmem:[#allocation7 + $0x1c] sm:$0xf]
    %v120 = vld [vmem:[#allocation7 + $0x20] sm:$0xf]
    %v121 = vld [vmem:[#allocation7 + $0x24] sm:$0xf]
    %v122 = vld [vmem:[#allocation7 + $0x28] sm:$0xf]
    %v123 = vld [vmem:[#allocation7 + $0x2c] sm:$0xf]
    %v124 = vld [vmem:[#allocation7 + $0x30] sm:$0xf]
    %v125 = vld [vmem:[#allocation7 + $0x34] sm:$0xf]
    %v126 = vld [vmem:[#allocation7 + $0x38] sm:$0xf]
    %v127 = vld [vmem:[#allocation7 + $0x3c] sm:$0xf]
    %v144 = vunpack.c.l.b16 %v96
    %v145 = vunpack.c.l.b16 %v97
    %v146 = vunpack.c.l.b16 %v98
    %v147 = vunpack.c.l.b16 %v99
    %v148 = vunpack.c.l.b16 %v100
    %v149 = vunpack.c.l.b16 %v101
    %v150 = vunpack.c.l.b16 %v102
    %v151 = vunpack.c.l.b16 %v103
    %v152 = vunpack.c.l.b16 %v104
    %v153 = vunpack.c.l.b16 %v105
    %v154 = vunpack.c.l.b16 %v106
    %v155 = vunpack.c.l.b16 %v107
    %v156 = vunpack.c.l.b16 %v108
    %v157 = vunpack.c.l.b16 %v109
    %v158 = vunpack.c.l.b16 %v110
    %v159 = vunpack.c.l.b16 %v111
    %v160 = vpack.c.b16 %v145, %v144
    %v161 = vpack.c.b16 %v147, %v146
    %v162 = vpack.c.b16 %v149, %v148
    %v163 = vpack.c.b16 %v151, %v150
    %v164 = vpack.c.b16 %v153, %v152
    %v165 = vpack.c.b16 %v155, %v154
    %v166 = vpack.c.b16 %v157, %v156
    %v167 = vpack.c.b16 %v159, %v158
    %v192 = vunpack.c.l.b16 %v112
    %v193 = vunpack.c.l.b16 %v113
    %v194 = vunpack.c.l.b16 %v114
    %v195 = vunpack.c.l.b16 %v115
    %v196 = vunpack.c.l.b16 %v116
    %v197 = vunpack.c.l.b16 %v117
    %v198 = vunpack.c.l.b16 %v118
    %v199 = vunpack.c.l.b16 %v119
    %v200 = vunpack.c.l.b16 %v120
    %v201 = vunpack.c.l.b16 %v121
    %v202 = vunpack.c.l.b16 %v122
    %v203 = vunpack.c.l.b16 %v123
    %v204 = vunpack.c.l.b16 %v124
    %v205 = vunpack.c.l.b16 %v125
    %v206 = vunpack.c.l.b16 %v126
    %v207 = vunpack.c.l.b16 %v127
    %v208 = vpack.c.b16 %v193, %v192
    %v209 = vpack.c.b16 %v195, %v194
    %v210 = vpack.c.b16 %v197, %v196
    %v211 = vpack.c.b16 %v199, %v198
    %v212 = vpack.c.b16 %v201, %v200
    %v213 = vpack.c.b16 %v203, %v202
    %v214 = vpack.c.b16 %v205, %v204
    %v215 = vpack.c.b16 %v207, %v206
    %224 = vmatprep.subr.bf16.mxu0 0
    %225 = vmatpush1.bf16.msra.mxu0 %v215
    %226 = vmatprep.subr.bf16.mxu0 0
    %227 = vmatpush1.bf16.msra.mxu0 %v214
    %228 = vmatprep.subr.bf16.mxu0 0
    %229 = vmatpush1.bf16.msra.mxu0 %v213
    %230 = vmatprep.subr.bf16.mxu0 0
    %231 = vmatpush1.bf16.msra.mxu0 %v212
    %232 = vmatprep.subr.bf16.mxu0 0
    %233 = vmatpush1.bf16.msra.mxu0 %v211
    %234 = vmatprep.subr.bf16.mxu0 0
    %235 = vmatpush1.bf16.msra.mxu0 %v210
    %236 = vmatprep.subr.bf16.mxu0 0
    %237 = vmatpush1.bf16.msra.mxu0 %v209
    %238 = vmatprep.subr.bf16.mxu0 0
    %239 = vmatpush1.bf16.msra.mxu0 %v208
    %240 = vmatprep.subr.bf16.mxu0 0
    %241 = vmatpush2.bf16.msra.mxu0 0
    %242 = vmatprep.subr.bf16.mxu0 0
    %243 = vmatpush2.bf16.msra.mxu0 0
    %244 = vmatprep.subr.bf16.mxu0 0
    %245 = vmatpush2.bf16.msra.mxu0 0
    %246 = vmatprep.subr.bf16.mxu0 0
    %247 = vmatpush2.bf16.msra.mxu0 0
    %248 = vmatprep.subr.bf16.mxu0 0
    %249 = vmatpush2.bf16.msra.mxu0 0
    %250 = vmatprep.subr.bf16.mxu0 0
    %251 = vmatpush2.bf16.msra.mxu0 0
    %252 = vmatprep.subr.bf16.mxu0 0
    %253 = vmatpush2.bf16.msra.mxu0 0
    %254 = vmatprep.subr.bf16.mxu0 0
    %255 = vmatpush2.bf16.msra.mxu0 0
    %256 = vmatprep.mubr.bf16.mxu0 0
    %257 = vmatmul.mubr.bf16.gmra.mxu0 %v160
    %v258 = vpop.f32.mrf.mxu0
    %v259 = vadd.f32 0.0, %v258
    %v260 = vpop.f32.mrf.mxu0
    %v261 = vpop.f32.mrf.mxu0
    %v262 = vadd.f32 0.0, %v261
    %v263 = vpop.f32.mrf.mxu0
    %264 = vmatprep.mubr.bf16.mxu0 0
    %265 = vmatmul.mubr.bf16.gmra.mxu0 %v161
    %v266 = vpop.f32.mrf.mxu0
    %v267 = vadd.f32 0.0, %v266
    %v268 = vpop.f32.mrf.mxu0
    %v269 = vpop.f32.mrf.mxu0
    %v270 = vadd.f32 0.0, %v269
    %v271 = vpop.f32.mrf.mxu0
    %272 = vmatprep.mubr.bf16.mxu0 0
    %273 = vmatmul.mubr.bf16.gmra.mxu0 %v162
    %v274 = vpop.f32.mrf.mxu0
    %v275 = vadd.f32 0.0, %v274
    %v276 = vpop.f32.mrf.mxu0
    %v277 = vpop.f32.mrf.mxu0
    %v278 = vadd.f32 0.0, %v277
    %v279 = vpop.f32.mrf.mxu0
    %280 = vmatprep.mubr.bf16.mxu0 0
    %281 = vmatmul.mubr.bf16.gmra.mxu0 %v163
    %v282 = vpop.f32.mrf.mxu0
    %v283 = vadd.f32 0.0, %v282
    %v284 = vpop.f32.mrf.mxu0
    %v285 = vpop.f32.mrf.mxu0
    %v286 = vadd.f32 0.0, %v285
    %v287 = vpop.f32.mrf.mxu0
    %288 = vmatprep.mubr.bf16.mxu0 0
    %289 = vmatmul.mubr.bf16.gmra.mxu0 %v164
    %v290 = vpop.f32.mrf.mxu0
    %v291 = vadd.f32 0.0, %v290
    %v292 = vpop.f32.mrf.mxu0
    %v293 = vpop.f32.mrf.mxu0
    %v294 = vadd.f32 0.0, %v293
    %v295 = vpop.f32.mrf.mxu0
    %296 = vmatprep.mubr.bf16.mxu0 0
    %297 = vmatmul.mubr.bf16.gmra.mxu0 %v165
    %v298 = vpop.f32.mrf.mxu0
    %v299 = vadd.f32 0.0, %v298
    %v300 = vpop.f32.mrf.mxu0
    %v301 = vpop.f32.mrf.mxu0
    %v302 = vadd.f32 0.0, %v301
    %v303 = vpop.f32.mrf.mxu0
    %304 = vmatprep.mubr.bf16.mxu0 0
    %305 = vmatmul.mubr.bf16.gmra.mxu0 %v166
    %v306 = vpop.f32.mrf.mxu0
    %v307 = vadd.f32 0.0, %v306
    %v308 = vpop.f32.mrf.mxu0
    %v309 = vpop.f32.mrf.mxu0
    %v310 = vadd.f32 0.0, %v309
    %v311 = vpop.f32.mrf.mxu0
    %312 = vmatprep.mubr.bf16.mxu0 0
    %313 = vmatmul.mubr.bf16.gmra.mxu0 %v167
    %v314 = vpop.f32.mrf.mxu0
    %v315 = vadd.f32 0.0, %v314
    %v316 = vpop.f32.mrf.mxu0
    %v317 = vpop.f32.mrf.mxu0
    %v318 = vadd.f32 0.0, %v317
    %v319 = vpop.f32.mrf.mxu0
    %320 = vdwg.mxu0
    %v321 = vpack.c.bf16 %v262, %v259
    %v322 = vpack.c.bf16 %v270, %v267
    %v323 = vpack.c.bf16 %v278, %v275
    %v324 = vpack.c.bf16 %v286, %v283
    %v325 = vpack.c.bf16 %v294, %v291
    %v326 = vpack.c.bf16 %v302, %v299
    %v327 = vpack.c.bf16 %v310, %v307
    %v328 = vpack.c.bf16 %v318, %v315
    %v329 = vld [vmem:[%s3] sm:$0x1]
    %v331 = vlaneseq
    %v332 = vshrl.u32 %v331, 7
    %v333 = vsub.s32 0, %v332
    %v334 = vrot.slane %v329, %v333
    %v352 = vunpack.c.l.b16 %v80
    %v353 = vunpack.c.l.b16 %v81
    %v354 = vunpack.c.l.b16 %v82
    %v355 = vunpack.c.l.b16 %v83
    %v356 = vunpack.c.l.b16 %v84
    %v357 = vunpack.c.l.b16 %v85
    %v358 = vunpack.c.l.b16 %v86
    %v359 = vunpack.c.l.b16 %v87
    %v360 = vunpack.c.l.b16 %v88
    %v361 = vunpack.c.l.b16 %v89
    %v362 = vunpack.c.l.b16 %v90
    %v363 = vunpack.c.l.b16 %v91
    %v364 = vunpack.c.l.b16 %v92
    %v365 = vunpack.c.l.b16 %v93
    %v366 = vunpack.c.l.b16 %v94
    %v367 = vunpack.c.l.b16 %v95
    %v368 = vpack.c.b16 %v353, %v352
    %v369 = vpack.c.b16 %v355, %v354
    %v370 = vpack.c.b16 %v357, %v356
    %v371 = vpack.c.b16 %v359, %v358
    %v372 = vpack.c.b16 %v361, %v360
    %v373 = vpack.c.b16 %v363, %v362
    %v374 = vpack.c.b16 %v365, %v364
    %v375 = vpack.c.b16 %v367, %v366
    %384 = vmatprep.subr.bf16.mxu0 0
    %385 = vmatpush1.bf16.msra.mxu0 %v328
    %386 = vmatprep.subr.bf16.mxu0 0
    %387 = vmatpush1.bf16.msra.mxu0 %v327
    %388 = vmatprep.subr.bf16.mxu0 0
    %389 = vmatpush1.bf16.msra.mxu0 %v326
    %390 = vmatprep.subr.bf16.mxu0 0
    %391 = vmatpush1.bf16.msra.mxu0 %v325
    %392 = vmatprep.subr.bf16.mxu0 0
    %393 = vmatpush1.bf16.msra.mxu0 %v324
    %394 = vmatprep.subr.bf16.mxu0 0
    %395 = vmatpush1.bf16.msra.mxu0 %v323
    %396 = vmatprep.subr.bf16.mxu0 0
    %397 = vmatpush1.bf16.msra.mxu0 %v322
    %398 = vmatprep.subr.bf16.mxu0 0
    %399 = vmatpush1.bf16.msra.mxu0 %v321
    %400 = vmatprep.subr.bf16.mxu0 0
    %401 = vmatpush2.bf16.msra.mxu0 0
    %402 = vmatprep.subr.bf16.mxu0 0
    %403 = vmatpush2.bf16.msra.mxu0 0
    %404 = vmatprep.subr.bf16.mxu0 0
    %405 = vmatpush2.bf16.msra.mxu0 0
    %406 = vmatprep.subr.bf16.mxu0 0
    %407 = vmatpush2.bf16.msra.mxu0 0
    %408 = vmatprep.subr.bf16.mxu0 0
    %409 = vmatpush2.bf16.msra.mxu0 0
    %410 = vmatprep.subr.bf16.mxu0 0
    %411 = vmatpush2.bf16.msra.mxu0 0
    %412 = vmatprep.subr.bf16.mxu0 0
    %413 = vmatpush2.bf16.msra.mxu0 0
    %414 = vmatprep.subr.bf16.mxu0 0
    %415 = vmatpush2.bf16.msra.mxu0 0
    %416 = vmatprep.mubr.bf16.mxu0 0
    %417 = vmatmul.mubr.bf16.gmra.mxu0 %v368
    %v418 = vpop.f32.mrf.mxu0
    %v419 = vadd.f32 %v334, %v418
    %v420 = vpop.f32.mrf.mxu0
    %v421 = vpop.f32.mrf.mxu0
    %v422 = vadd.f32 %v334, %v421
    %v423 = vpop.f32.mrf.mxu0
    %424 = vmatprep.mubr.bf16.mxu0 0
    %425 = vmatmul.mubr.bf16.gmra.mxu0 %v369
    %v426 = vpop.f32.mrf.mxu0
    %v427 = vadd.f32 %v334, %v426
    %v428 = vpop.f32.mrf.mxu0
    %v429 = vpop.f32.mrf.mxu0
    %v430 = vadd.f32 %v334, %v429
    %v431 = vpop.f32.mrf.mxu0
    %432 = vmatprep.mubr.bf16.mxu0 0
    %433 = vmatmul.mubr.bf16.gmra.mxu0 %v370
    %v434 = vpop.f32.mrf.mxu0
    %v435 = vadd.f32 %v334, %v434
    %v436 = vpop.f32.mrf.mxu0
    %v437 = vpop.f32.mrf.mxu0
    %v438 = vadd.f32 %v334, %v437
    %v439 = vpop.f32.mrf.mxu0
    %440 = vmatprep.mubr.bf16.mxu0 0
    %441 = vmatmul.mubr.bf16.gmra.mxu0 %v371
    %v442 = vpop.f32.mrf.mxu0
    %v443 = vadd.f32 %v334, %v442
    %v444 = vpop.f32.mrf.mxu0
    %v445 = vpop.f32.mrf.mxu0
    %v446 = vadd.f32 %v334, %v445
    %v447 = vpop.f32.mrf.mxu0
    %448 = vmatprep.mubr.bf16.mxu0 0
    %449 = vmatmul.mubr.bf16.gmra.mxu0 %v372
    %v450 = vpop.f32.mrf.mxu0
    %v451 = vadd.f32 %v334, %v450
    %v452 = vpop.f32.mrf.mxu0
    %v453 = vpop.f32.mrf.mxu0
    %v454 = vadd.f32 %v334, %v453
    %v455 = vpop.f32.mrf.mxu0
    %456 = vmatprep.mubr.bf16.mxu0 0
    %457 = vmatmul.mubr.bf16.gmra.mxu0 %v373
    %v458 = vpop.f32.mrf.mxu0
    %v459 = vadd.f32 %v334, %v458
    %v460 = vpop.f32.mrf.mxu0
    %v461 = vpop.f32.mrf.mxu0
    %v462 = vadd.f32 %v334, %v461
    %v463 = vpop.f32.mrf.mxu0
    %464 = vmatprep.mubr.bf16.mxu0 0
    %465 = vmatmul.mubr.bf16.gmra.mxu0 %v374
    %v466 = vpop.f32.mrf.mxu0
    %v467 = vadd.f32 %v334, %v466
    %v468 = vpop.f32.mrf.mxu0
    %v469 = vpop.f32.mrf.mxu0
    %v470 = vadd.f32 %v334, %v469
    %v471 = vpop.f32.mrf.mxu0
    %472 = vmatprep.mubr.bf16.mxu0 0
    %473 = vmatmul.mubr.bf16.gmra.mxu0 %v375
    %v474 = vpop.f32.mrf.mxu0
    %v475 = vadd.f32 %v334, %v474
    %v476 = vpop.f32.mrf.mxu0
    %v477 = vpop.f32.mrf.mxu0
    %v478 = vadd.f32 %v334, %v477
    %v479 = vpop.f32.mrf.mxu0
    %480 = vdwg.mxu0
    %v481 = vmax.f32 %v419, 0.0
    %v482 = vmax.f32 %v422, 0.0
    %v483 = vmax.f32 %v427, 0.0
    %v484 = vmax.f32 %v430, 0.0
    %v485 = vmax.f32 %v435, 0.0
    %v486 = vmax.f32 %v438, 0.0
    %v487 = vmax.f32 %v443, 0.0
    %v488 = vmax.f32 %v446, 0.0
    %v489 = vmax.f32 %v451, 0.0
    %v490 = vmax.f32 %v454, 0.0
    %v491 = vmax.f32 %v459, 0.0
    %v492 = vmax.f32 %v462, 0.0
    %v493 = vmax.f32 %v467, 0.0
    %v494 = vmax.f32 %v470, 0.0
    %v495 = vmax.f32 %v475, 0.0
    %v496 = vmax.f32 %v478, 0.0
    %v497 = vpack.c.bf16 %v482, %v481
    %v498 = vpack.c.bf16 %v484, %v483
    %v499 = vpack.c.bf16 %v486, %v485
    %v500 = vpack.c.bf16 %v488, %v487
    %v501 = vpack.c.bf16 %v490, %v489
    %v502 = vpack.c.bf16 %v492, %v491
    %v503 = vpack.c.bf16 %v494, %v493
    %v504 = vpack.c.bf16 %v496, %v495
    %v505 = vld [vmem:[#allocation8] sm:$0xf]
    %v506 = vld [vmem:[#allocation8 + $0x4] sm:$0xf]
    %v507 = vld [vmem:[#allocation8 + $0x8] sm:$0xf]
    %v508 = vld [vmem:[#allocation8 + $0xc] sm:$0xf]
    %v509 = vld [vmem:[#allocation8 + $0x10] sm:$0xf]
    %v510 = vld [vmem:[#allocation8 + $0x14] sm:$0xf]
    %v511 = vld [vmem:[#allocation8 + $0x18] sm:$0xf]
    %v512 = vld [vmem:[#allocation8 + $0x1c] sm:$0xf]
    %v513 = vld [vmem:[#allocation8 + $0x20] sm:$0xf]
    %v514 = vld [vmem:[#allocation8 + $0x24] sm:$0xf]
    %v515 = vld [vmem:[#allocation8 + $0x28] sm:$0xf]
    %v516 = vld [vmem:[#allocation8 + $0x2c] sm:$0xf]
    %v517 = vld [vmem:[#allocation8 + $0x30] sm:$0xf]
    %v518 = vld [vmem:[#allocation8 + $0x34] sm:$0xf]
    %v519 = vld [vmem:[#allocation8 + $0x38] sm:$0xf]
    %v520 = vld [vmem:[#allocation8 + $0x3c] sm:$0xf]
    %v537 = vunpack.c.l.b16 %v505
    %v538 = vunpack.c.l.b16 %v506
    %v539 = vunpack.c.l.b16 %v507
    %v540 = vunpack.c.l.b16 %v508
    %v541 = vunpack.c.l.b16 %v509
    %v542 = vunpack.c.l.b16 %v510
    %v543 = vunpack.c.l.b16 %v511
    %v544 = vunpack.c.l.b16 %v512
    %v545 = vunpack.c.l.b16 %v513
    %v546 = vunpack.c.l.b16 %v514
    %v547 = vunpack.c.l.b16 %v515
    %v548 = vunpack.c.l.b16 %v516
    %v549 = vunpack.c.l.b16 %v517
    %v550 = vunpack.c.l.b16 %v518
    %v551 = vunpack.c.l.b16 %v519
    %v552 = vunpack.c.l.b16 %v520
    %v553 = vpack.c.b16 %v538, %v537
    %v554 = vpack.c.b16 %v540, %v539
    %v555 = vpack.c.b16 %v542, %v541
    %v556 = vpack.c.b16 %v544, %v543
    %v557 = vpack.c.b16 %v546, %v545
    %v558 = vpack.c.b16 %v548, %v547
    %v559 = vpack.c.b16 %v550, %v549
    %v560 = vpack.c.b16 %v552, %v551
    %569 = vmatprep.subr.bf16.mxu0 0
    %570 = vmatpush1.bf16.msra.mxu0 %v560
    %571 = vmatprep.subr.bf16.mxu0 0
    %572 = vmatpush1.bf16.msra.mxu0 %v559
    %573 = vmatprep.subr.bf16.mxu0 0
    %574 = vmatpush1.bf16.msra.mxu0 %v558
    %575 = vmatprep.subr.bf16.mxu0 0
    %576 = vmatpush1.bf16.msra.mxu0 %v557
    %577 = vmatprep.subr.bf16.mxu0 0
    %578 = vmatpush1.bf16.msra.mxu0 %v556
    %579 = vmatprep.subr.bf16.mxu0 0
    %580 = vmatpush1.bf16.msra.mxu0 %v555
    %581 = vmatprep.subr.bf16.mxu0 0
    %582 = vmatpush1.bf16.msra.mxu0 %v554
    %583 = vmatprep.subr.bf16.mxu0 0
    %584 = vmatpush1.bf16.msra.mxu0 %v553
    %585 = vmatprep.subr.bf16.mxu0 0
    %586 = vmatpush2.bf16.msra.mxu0 0
    %587 = vmatprep.subr.bf16.mxu0 0
    %588 = vmatpush2.bf16.msra.mxu0 0
    %589 = vmatprep.subr.bf16.mxu0 0
    %590 = vmatpush2.bf16.msra.mxu0 0
    %591 = vmatprep.subr.bf16.mxu0 0
    %592 = vmatpush2.bf16.msra.mxu0 0
    %593 = vmatprep.subr.bf16.mxu0 0
    %594 = vmatpush2.bf16.msra.mxu0 0
    %595 = vmatprep.subr.bf16.mxu0 0
    %596 = vmatpush2.bf16.msra.mxu0 0
    %597 = vmatprep.subr.bf16.mxu0 0
    %598 = vmatpush2.bf16.msra.mxu0 0
    %599 = vmatprep.subr.bf16.mxu0 0
    %600 = vmatpush2.bf16.msra.mxu0 0
    %601 = vmatprep.mubr.bf16.mxu0 0
    %602 = vmatmul.mubr.bf16.gmra.mxu0 %v497
    %v603 = vpop.f32.mrf.mxu0
    %v604 = vadd.f32 0.0, %v603
    %v605 = vpop.f32.mrf.mxu0
    %v606 = vpop.f32.mrf.mxu0
    %v607 = vadd.f32 0.0, %v606
    %v608 = vpop.f32.mrf.mxu0
    %609 = vmatprep.mubr.bf16.mxu0 0
    %610 = vmatmul.mubr.bf16.gmra.mxu0 %v498
    %v611 = vpop.f32.mrf.mxu0
    %v612 = vadd.f32 0.0, %v611
    %v613 = vpop.f32.mrf.mxu0
    %v614 = vpop.f32.mrf.mxu0
    %v615 = vadd.f32 0.0, %v614
    %v616 = vpop.f32.mrf.mxu0
    %617 = vmatprep.mubr.bf16.mxu0 0
    %618 = vmatmul.mubr.bf16.gmra.mxu0 %v499
    %v619 = vpop.f32.mrf.mxu0
    %v620 = vadd.f32 0.0, %v619
    %v621 = vpop.f32.mrf.mxu0
    %v622 = vpop.f32.mrf.mxu0
    %v623 = vadd.f32 0.0, %v622
    %v624 = vpop.f32.mrf.mxu0
    %625 = vmatprep.mubr.bf16.mxu0 0
    %626 = vmatmul.mubr.bf16.gmra.mxu0 %v500
    %v627 = vpop.f32.mrf.mxu0
    %v628 = vadd.f32 0.0, %v627
    %v629 = vpop.f32.mrf.mxu0
    %v630 = vpop.f32.mrf.mxu0
    %v631 = vadd.f32 0.0, %v630
    %v632 = vpop.f32.mrf.mxu0
    %633 = vmatprep.mubr.bf16.mxu0 0
    %634 = vmatmul.mubr.bf16.gmra.mxu0 %v501
    %v635 = vpop.f32.mrf.mxu0
    %v636 = vadd.f32 0.0, %v635
    %v637 = vpop.f32.mrf.mxu0
    %v638 = vpop.f32.mrf.mxu0
    %v639 = vadd.f32 0.0, %v638
    %v640 = vpop.f32.mrf.mxu0
    %641 = vmatprep.mubr.bf16.mxu0 0
    %642 = vmatmul.mubr.bf16.gmra.mxu0 %v502
    %v643 = vpop.f32.mrf.mxu0
    %v644 = vadd.f32 0.0, %v643
    %v645 = vpop.f32.mrf.mxu0
    %v646 = vpop.f32.mrf.mxu0
    %v647 = vadd.f32 0.0, %v646
    %v648 = vpop.f32.mrf.mxu0
    %649 = vmatprep.mubr.bf16.mxu0 0
    %650 = vmatmul.mubr.bf16.gmra.mxu0 %v503
    %v651 = vpop.f32.mrf.mxu0
    %v652 = vadd.f32 0.0, %v651
    %v653 = vpop.f32.mrf.mxu0
    %v654 = vpop.f32.mrf.mxu0
    %v655 = vadd.f32 0.0, %v654
    %v656 = vpop.f32.mrf.mxu0
    %657 = vmatprep.mubr.bf16.mxu0 0
    %658 = vmatmul.mubr.bf16.gmra.mxu0 %v504
    %v659 = vpop.f32.mrf.mxu0
    %v660 = vadd.f32 0.0, %v659
    %v661 = vpop.f32.mrf.mxu0
    %v662 = vpop.f32.mrf.mxu0
    %v663 = vadd.f32 0.0, %v662
    %v664 = vpop.f32.mrf.mxu0
    %665 = vdwg.mxu0
    %v666 = vpack.c.bf16 %v607, %v604
    %v667 = vpack.c.bf16 %v615, %v612
    %v668 = vpack.c.bf16 %v623, %v620
    %v669 = vpack.c.bf16 %v631, %v628
    %v670 = vpack.c.bf16 %v639, %v636
    %v671 = vpack.c.bf16 %v647, %v644
    %v672 = vpack.c.bf16 %v655, %v652
    %v673 = vpack.c.bf16 %v663, %v660
    %v674 = vld [vmem:[%s5] sm:$0x1]
    %v676 = vlaneseq
    %v677 = vshrl.u32 %v676, 7
    %v678 = vsub.s32 0, %v677
    %v679 = vrot.slane %v674, %v678
    %681 = vmatprep.subr.bf16.mxu0 0
    %682 = vmatpush1.bf16.msra.mxu0 %v673
    %683 = vmatprep.subr.bf16.mxu0 0
    %684 = vmatpush1.bf16.msra.mxu0 %v672
    %685 = vmatprep.subr.bf16.mxu0 0
    %686 = vmatpush1.bf16.msra.mxu0 %v671
    %687 = vmatprep.subr.bf16.mxu0 0
    %688 = vmatpush1.bf16.msra.mxu0 %v670
    %689 = vmatprep.subr.bf16.mxu0 0
    %690 = vmatpush1.bf16.msra.mxu0 %v669
    %691 = vmatprep.subr.bf16.mxu0 0
    %692 = vmatpush1.bf16.msra.mxu0 %v668
    %693 = vmatprep.subr.bf16.mxu0 0
    %694 = vmatpush1.bf16.msra.mxu0 %v667
    %695 = vmatprep.subr.bf16.mxu0 0
    %696 = vmatpush1.bf16.msra.mxu0 %v666
    %697 = vmatprep.subr.bf16.mxu0 0
    %698 = vmatpush2.bf16.msra.mxu0 0
    %699 = vmatprep.subr.bf16.mxu0 0
    %700 = vmatpush2.bf16.msra.mxu0 0
    %701 = vmatprep.subr.bf16.mxu0 0
    %702 = vmatpush2.bf16.msra.mxu0 0
    %703 = vmatprep.subr.bf16.mxu0 0
    %704 = vmatpush2.bf16.msra.mxu0 0
    %705 = vmatprep.subr.bf16.mxu0 0
    %706 = vmatpush2.bf16.msra.mxu0 0
    %707 = vmatprep.subr.bf16.mxu0 0
    %708 = vmatpush2.bf16.msra.mxu0 0
    %709 = vmatprep.subr.bf16.mxu0 0
    %710 = vmatpush2.bf16.msra.mxu0 0
    %711 = vmatprep.subr.bf16.mxu0 0
    %712 = vmatpush2.bf16.msra.mxu0 0
    %713 = vmatprep.mubr.bf16.mxu0 0
    %714 = vmatmul.mubr.bf16.gmra.mxu0 %v368
    %v715 = vpop.f32.mrf.mxu0
    %v716 = vadd.f32 %v679, %v715
    %v717 = vpop.f32.mrf.mxu0
    %v718 = vpop.f32.mrf.mxu0
    %v719 = vadd.f32 %v679, %v718
    %v720 = vpop.f32.mrf.mxu0
    %721 = vmatprep.mubr.bf16.mxu0 0
    %722 = vmatmul.mubr.bf16.gmra.mxu0 %v369
    %v723 = vpop.f32.mrf.mxu0
    %v724 = vadd.f32 %v679, %v723
    %v725 = vpop.f32.mrf.mxu0
    %v726 = vpop.f32.mrf.mxu0
    %v727 = vadd.f32 %v679, %v726
    %v728 = vpop.f32.mrf.mxu0
    %729 = vmatprep.mubr.bf16.mxu0 0
    %730 = vmatmul.mubr.bf16.gmra.mxu0 %v370
    %v731 = vpop.f32.mrf.mxu0
    %v732 = vadd.f32 %v679, %v731
    %v733 = vpop.f32.mrf.mxu0
    %v734 = vpop.f32.mrf.mxu0
    %v735 = vadd.f32 %v679, %v734
    %v736 = vpop.f32.mrf.mxu0
    %737 = vmatprep.mubr.bf16.mxu0 0
    %738 = vmatmul.mubr.bf16.gmra.mxu0 %v371
    %v739 = vpop.f32.mrf.mxu0
    %v740 = vadd.f32 %v679, %v739
    %v741 = vpop.f32.mrf.mxu0
    %v742 = vpop.f32.mrf.mxu0
    %v743 = vadd.f32 %v679, %v742
    %v744 = vpop.f32.mrf.mxu0
    %745 = vmatprep.mubr.bf16.mxu0 0
    %746 = vmatmul.mubr.bf16.gmra.mxu0 %v372
    %v747 = vpop.f32.mrf.mxu0
    %v748 = vadd.f32 %v679, %v747
    %v749 = vpop.f32.mrf.mxu0
    %v750 = vpop.f32.mrf.mxu0
    %v751 = vadd.f32 %v679, %v750
    %v752 = vpop.f32.mrf.mxu0
    %753 = vmatprep.mubr.bf16.mxu0 0
    %754 = vmatmul.mubr.bf16.gmra.mxu0 %v373
    %v755 = vpop.f32.mrf.mxu0
    %v756 = vadd.f32 %v679, %v755
    %v757 = vpop.f32.mrf.mxu0
    %v758 = vpop.f32.mrf.mxu0
    %v759 = vadd.f32 %v679, %v758
    %v760 = vpop.f32.mrf.mxu0
    %761 = vmatprep.mubr.bf16.mxu0 0
    %762 = vmatmul.mubr.bf16.gmra.mxu0 %v374
    %v763 = vpop.f32.mrf.mxu0
    %v764 = vadd.f32 %v679, %v763
    %v765 = vpop.f32.mrf.mxu0
    %v766 = vpop.f32.mrf.mxu0
    %v767 = vadd.f32 %v679, %v766
    %v768 = vpop.f32.mrf.mxu0
    %769 = vmatprep.mubr.bf16.mxu0 0
    %770 = vmatmul.mubr.bf16.gmra.mxu0 %v375
    %v771 = vpop.f32.mrf.mxu0
    %v772 = vadd.f32 %v679, %v771
    %v773 = vpop.f32.mrf.mxu0
    %v774 = vpop.f32.mrf.mxu0
    %v775 = vadd.f32 %v679, %v774
    %v776 = vpop.f32.mrf.mxu0
    %777 = vdwg.mxu0
    %778 = vst [vmem:[#allocation10] sm:$0xff] %v716
    %779 = vst [vmem:[#allocation10 + $0x8] sm:$0xff] %v719
    %780 = vst [vmem:[#allocation10 + $0x10] sm:$0xff] %v724
    %781 = vst [vmem:[#allocation10 + $0x18] sm:$0xff] %v727
    %782 = vst [vmem:[#allocation10 + $0x20] sm:$0xff] %v732
    %783 = vst [vmem:[#allocation10 + $0x28] sm:$0xff] %v735
    %784 = vst [vmem:[#allocation10 + $0x30] sm:$0xff] %v740
    %785 = vst [vmem:[#allocation10 + $0x38] sm:$0xff] %v743
    %786 = vst [vmem:[#allocation10 + $0x40] sm:$0xff] %v748
    %787 = vst [vmem:[#allocation10 + $0x48] sm:$0xff] %v751
    %788 = vst [vmem:[#allocation10 + $0x50] sm:$0xff] %v756
    %789 = vst [vmem:[#allocation10 + $0x58] sm:$0xff] %v759
    %790 = vst [vmem:[#allocation10 + $0x60] sm:$0xff] %v764
    %791 = vst [vmem:[#allocation10 + $0x68] sm:$0xff] %v767
    %792 = vst [vmem:[#allocation10 + $0x70] sm:$0xff] %v772
    %793 = vst [vmem:[#allocation10 + $0x78] sm:$0xff] %v775
    // Predicated region
    $region42: #{tpu_custom_call.1} parent=1 // pred_check
      _
    $region43: #{tpu_custom_call.1} parent=1 // pred_check_branch
      %795 = sbr.rel (0) target = $region45
    $region44: #{tpu_custom_call.1} parent=1 // pred_region
      %s797 = ssub.s32 2048, 2048
      %798 = vsyncadd [#allocation4], %s797
      %s799 = sshll.u32 [#allocation10], 4
      %s800 = int_to_ptr.vmem [resolvable:$true] %s799
      %805 = dma.vmem_to_hbm [thread:$0]  %s800, 2048, %s6, [#allocation4], 128, 128, 8
    $region45: #{tpu_custom_call.1} parent=1 // pred_fallthru
      _
    // Predicated region
    $region46: #{tpu_custom_call.1} parent=1 // pred_check
      _
    $region47: #{tpu_custom_call.1} parent=1 // pred_check_branch
      %807 = sbr.rel (0) target = $region49
    $region48: #{tpu_custom_call.1} parent=1 // pred_region
      %808 = dma.done [#allocation4], 2048
    $region49: #{tpu_custom_call.1} parent=1 // pred_fallthru
      _
    %809 = vsyncpa [#allocation3], 1
    %810 = vsyncpa [#allocation6], 1
    %811 = vsyncpa [#allocation9], 1
    %812 = vsyncpa [#allocation4], 1

</llo_original>
